<compile_context>
chip_gen: v6e
topology: v6e:2x2x1
jax: 0.10.0
libtpu: 0.0.40
codegen_flags: <defaults>
</compile_context>

<pallas_src>
import jax
import jax.numpy as jnp
from jax.experimental import pallas as pl
from jax.experimental.pallas import tpu as pltpu


def _primary_capsule_kernel(x_ref, w_ref, b_ref, out_ref, patch_ref):
    """One grid step == one group of Bt batch elements, all units/taps fused.

    x_ref:     (1, C, Wxp)  bf16  group input, columns = b_local*L + m (zero pad tail)
    w_ref:     (D*O, K*C)   bf16  all D Conv1d units flattened, k-major contraction
    b_ref:     (D*O, 1)     f32   all unit biases
    out_ref:   (1, D*O, Wp) f32   lane-dense output slab (Wp % 128 == 0)
    patch_ref: (K*C, Wp)    bf16  im2col scratch
    """
    C = x_ref.shape[1]
    KC = patch_ref.shape[0]
    K = KC // C
    Wp = out_ref.shape[2]

    x = x_ref[0]                                   # (C, Wxp)

    # im2col: row block [k*C : (k+1)*C] = x shifted by k.  Because the per-batch
    # column stride is L (>= Lout + K - 1), one static slice covers every batch
    # element in the group at once; the cross-batch bleed only lands in columns
    # l >= Lout, which the wrapper discards.  K is small/static -> unrolled
    # slice stores.  (pltpu.roll onto the XLU is a possible micro-opt here.)
    for k in range(K):
        patch_ref[k * C:(k + 1) * C, :] = x[:, k:k + Wp]

    # Single deep-contraction bf16 MXU GEMM, f32 accumulation, for all D*O
    # output channels and all Bt batch elements in the group at once.
    acc = jnp.dot(w_ref[...], patch_ref[...],
                  preferred_element_type=jnp.float32)      # (D*O, Wp) f32
    out_ref[0] = (acc + b_ref[...]).astype(out_ref.dtype)  # bias add kept in f32


def _choose_block_b(B, L, target_lanes):
    """Pick how many batch elements to pack into one grid step's lane axis."""
    bt = max(1, min(B, target_lanes // max(L, 1)))
    if B >= 2:
        # Keep >=2 grid steps so v7x's two TensorCores both get work
        # ("parallel" grid axis); v5e/v6e have 1 TC, unaffected.
        bt = min(bt, pl.cdiv(B, 2))
    return max(1, bt)


def primary_capsule_forward_stacked(feature, weights, biases, *,
                                    block_b=None, target_lanes=1024):
    """feature: (B, C, L) f32; weights: (D, O, C, K) f32; biases: (D, O) f32.

    Returns the stacked result (D, B, O, L - K + 1) in f32.
    """
    B, C, L = feature.shape
    D, O, C2, K = weights.shape
    assert C2 == C
    Lout = L - K + 1
    assert Lout > 0
    DO = D * O
    KC = K * C

    # --- batch blocking / lane packing ---
    if block_b is None:
        block_b = _choose_block_b(B, L, target_lanes)
    G = pl.cdiv(B, block_b)           # grid steps
    Bp = G * block_b                  # batch padded to a whole number of groups

    W = block_b * L                   # useful columns per group (stride L per batch)
    Wp = pl.cdiv(W, 128) * 128        # lane-dense GEMM / output width
    Wxp = pl.cdiv(Wp + K - 1, 128) * 128   # input width (room for all K tap shifts)

    # One-time layout plumbing on the (small) input side, fused by XLA:
    # (B,C,L) -> pad batch -> (G, Bt, C, L) -> (G, C, Bt, L) -> (G, C, Bt*L) -> pad lanes.
    x = feature.astype(jnp.bfloat16)
    x = jnp.pad(x, ((0, Bp - B), (0, 0), (0, 0)))
    x = x.reshape(G, block_b, C, L).transpose(0, 2, 1, 3).reshape(G, C, W)
    x = jnp.pad(x, ((0, 0), (0, 0), (0, Wxp - W)))

    # Flatten the D Conv1d units into one weight matrix, k-major over the
    # contraction dim so it matches the in-kernel im2col row order (k*C + c).
    w_kc = jnp.transpose(weights, (0, 1, 3, 2)).reshape(DO, KC).astype(jnp.bfloat16)
    b2 = biases.reshape(DO, 1).astype(jnp.float32)

    out = pl.pallas_call(
        _primary_capsule_kernel,
        out_shape=jax.ShapeDtypeStruct((G, DO, Wp), jnp.float32),
        grid_spec=pltpu.PrefetchScalarGridSpec(
            num_scalar_prefetch=0,
            grid=(G,),
            in_specs=[
                pl.BlockSpec((1, C, Wxp), lambda g: (g, 0, 0)),   # per-group input
                pl.BlockSpec((DO, KC), lambda g: (0, 0)),         # resident weights
                pl.BlockSpec((DO, 1), lambda g: (0, 0)),          # resident bias
            ],
            out_specs=pl.BlockSpec((1, DO, Wp), lambda g: (g, 0, 0)),
            scratch_shapes=[pltpu.VMEM((KC, Wp), jnp.bfloat16)],
        ),
        compiler_params=pltpu.CompilerParams(
            # Groups are independent -> shard across v7x's 2 TensorCores.
            dimension_semantics=("parallel",),
            # Explicit budget: per-step footprint < 0.5 MiB at target_lanes=1024,
            # comfortably inside v5e/v6e/v7x scoped VMEM.
            vmem_limit_bytes=32 * 1024 * 1024,
        ),
    )(x, w_kc, b2)

    # Dense un-pack (no 128-lane pad is re-read): column j of a group maps to
    # (b_local = j // L, l = j % L); drop the K-1 garbage tail per batch and
    # the padded batches, reorder to PyTorch's (D, B, O, Lout).
    out = out[:, :, :W].reshape(G, D, O, block_b, L)
    out = out[:, :, :, :, :Lout]
    out = out.transpose(1, 0, 3, 2, 4).reshape(D, Bp, O, Lout)[:, :B]
    return out


def primary_capsule_forward(feature, weights, biases, **kwargs):
    """Matches the PyTorch module: list of D arrays, each (B, O, L - K + 1)."""
    stacked = primary_capsule_forward_stacked(feature, weights, biases, **kwargs)
    # List return kept only for PyTorch-module parity; downstream code should
    # prefer the stacked tensor to avoid D extra slice ops.
    return [stacked[d] for d in range(stacked.shape[0])]


if __name__ == "__main__":
    # Small shapes implied by the module's __init__:
    #   args.motif_num       = 4   (Conv1d in_channels)
    #   args.Super_Node_Dim  = 8   (Conv1d kernel_size)
    #   capsule_per_node     = 8   (Conv1d out_channels)
    #   capsule_dim          = 4   (number of Conv1d units)
    B, C, L = 2, 4, 16            # feature is NCL, same as PyTorch Conv1d NCW
    D, O, K = 4, 8, 8
    Lout = L - K + 1

    key = jax.random.PRNGKey(0)
    kx, kw, kb = jax.random.split(key, 3)
    feature = jax.random.normal(kx, (B, C, L), dtype=jnp.float32)
    # Deterministic synthetic parameter init (PyTorch-like uniform scale).
    bound = 1.0 / jnp.sqrt(jnp.float32(C * K))
    weights = jax.random.uniform(kw, (D, O, C, K), jnp.float32, -bound, bound)
    biases = jax.random.uniform(kb, (D, O), jnp.float32, -bound, bound)

    hidden = primary_capsule_forward(feature, weights, biases)
    hidden = [jax.block_until_ready(h) for h in hidden]

    # References:
    #  (a) tight check against the same bf16-rounded operands (validates the
    #      kernel's GEMM / im2col / bias exactly, up to f32 accumulation order),
    #  (b) loose parity check against the full-f32 PyTorch-equivalent math
    #      (bf16 operand rounding over a depth-32 contraction).
    x_bf = feature.astype(jnp.bfloat16).astype(jnp.float32)
    w_bf = weights.astype(jnp.bfloat16).astype(jnp.float32)
    xs_bf = jnp.stack([x_bf[:, :, k:k + Lout] for k in range(K)], axis=2)     # (B,C,K,Lout)
    ref_bf = jnp.einsum("bckl,dock->dbol", xs_bf, w_bf,
                        precision=jax.lax.Precision.HIGHEST) + biases[:, None, :, None]
    xs_f32 = jnp.stack([feature[:, :, k:k + Lout] for k in range(K)], axis=2)
    ref_f32 = jnp.einsum("bckl,dock->dbol", xs_f32, weights,
                         precision=jax.lax.Precision.HIGHEST) + biases[:, None, :, None]

    for d in range(D):
        assert hidden[d].shape == (B, O, Lout), hidden[d].shape
        assert jnp.allclose(hidden[d], ref_bf[d], rtol=2e-3, atol=2e-3), \
            f"kernel mismatch in unit {d}"
        assert jnp.allclose(hidden[d], ref_f32[d], rtol=1e-1, atol=1e-1), \
            f"f32 parity drift in unit {d}"

    print("KERNEL_OK")
</pallas_src>

<mosaic_0001>
module attributes {stable_mosaic.version = 11 : i64} {
  func.func @_primary_capsule_kernel(%arg0: i32, %arg1: memref<1x4x256xbf16, #tpu.memory_space<vmem>>, %arg2: memref<32x32xbf16, #tpu.memory_space<vmem>>, %arg3: memref<32x1xf32, #tpu.memory_space<vmem>>, %arg4: memref<1x32x128xf32, #tpu.memory_space<vmem>>, %arg5: memref<32x128xbf16, #tpu.memory_space<vmem>>) attributes {dimension_semantics = [#tpu.dimension_semantics<parallel>], iteration_bounds = array<i64: 2>, scalar_prefetch = 0 : i64, scratch_operands = 1 : i64, tpu.core_type = #tpu.core_type<tc>, window_params = [{transform_indices = @transform_0, window_bounds = array<i64: 1, 4, 256>}, {pipeline_mode = #tpu.pipeline_mode<synchronous>, transform_indices = @transform_1, window_bounds = array<i64: 32, 32>}, {pipeline_mode = #tpu.pipeline_mode<synchronous>, transform_indices = @transform_2, window_bounds = array<i64: 32, 1>}, {transform_indices = @transform_3, window_bounds = array<i64: 1, 32, 128>}]} {
    %c0 = arith.constant 0 : index
    %c0_0 = arith.constant 0 : index
    %c0_1 = arith.constant 0 : index
    %0 = vector.load %arg1[%c0, %c0_0, %c0_1] : memref<1x4x256xbf16, #tpu.memory_space<vmem>>, vector<1x4x256xbf16>
    %1 = vector.shape_cast %0 : vector<1x4x256xbf16> to vector<4x256xbf16>
    %2 = vector.extract_strided_slice %1 {offsets = [0, 0], sizes = [4, 128], strides = [1, 1]} : vector<4x256xbf16> to vector<4x128xbf16>
    %c0_2 = arith.constant 0 : index
    %c0_3 = arith.constant 0 : index
    %3 = vector.load %arg5[%c0_2, %c0_3] : memref<32x128xbf16, #tpu.memory_space<vmem>>, vector<4x128xbf16>
    tpu.vector_store %arg5[%c0_2, %c0_3], %2 {strides = array<i32>} : memref<32x128xbf16, #tpu.memory_space<vmem>>, vector<4x128xbf16>,
    %4 = vector.extract_strided_slice %1 {offsets = [0, 1], sizes = [4, 128], strides = [1, 1]} : vector<4x256xbf16> to vector<4x128xbf16>
    %c4 = arith.constant 4 : index
    %c0_4 = arith.constant 0 : index
    %5 = vector.load %arg5[%c4, %c0_4] : memref<32x128xbf16, #tpu.memory_space<vmem>>, vector<4x128xbf16>
    tpu.vector_store %arg5[%c4, %c0_4], %4 {strides = array<i32>} : memref<32x128xbf16, #tpu.memory_space<vmem>>, vector<4x128xbf16>,
    %6 = vector.extract_strided_slice %1 {offsets = [0, 2], sizes = [4, 128], strides = [1, 1]} : vector<4x256xbf16> to vector<4x128xbf16>
    %c8 = arith.constant 8 : index
    %c0_5 = arith.constant 0 : index
    %7 = vector.load %arg5[%c8, %c0_5] : memref<32x128xbf16, #tpu.memory_space<vmem>>, vector<4x128xbf16>
    tpu.vector_store %arg5[%c8, %c0_5], %6 {strides = array<i32>} : memref<32x128xbf16, #tpu.memory_space<vmem>>, vector<4x128xbf16>,
    %8 = vector.extract_strided_slice %1 {offsets = [0, 3], sizes = [4, 128], strides = [1, 1]} : vector<4x256xbf16> to vector<4x128xbf16>
    %c12 = arith.constant 12 : index
    %c0_6 = arith.constant 0 : index
    %9 = vector.load %arg5[%c12, %c0_6] : memref<32x128xbf16, #tpu.memory_space<vmem>>, vector<4x128xbf16>
    tpu.vector_store %arg5[%c12, %c0_6], %8 {strides = array<i32>} : memref<32x128xbf16, #tpu.memory_space<vmem>>, vector<4x128xbf16>,
    %10 = vector.extract_strided_slice %1 {offsets = [0, 4], sizes = [4, 128], strides = [1, 1]} : vector<4x256xbf16> to vector<4x128xbf16>
    %c16 = arith.constant 16 : index
    %c0_7 = arith.constant 0 : index
    %11 = vector.load %arg5[%c16, %c0_7] : memref<32x128xbf16, #tpu.memory_space<vmem>>, vector<4x128xbf16>
    tpu.vector_store %arg5[%c16, %c0_7], %10 {strides = array<i32>} : memref<32x128xbf16, #tpu.memory_space<vmem>>, vector<4x128xbf16>,
    %12 = vector.extract_strided_slice %1 {offsets = [0, 5], sizes = [4, 128], strides = [1, 1]} : vector<4x256xbf16> to vector<4x128xbf16>
    %c20 = arith.constant 20 : index
    %c0_8 = arith.constant 0 : index
    %13 = vector.load %arg5[%c20, %c0_8] : memref<32x128xbf16, #tpu.memory_space<vmem>>, vector<4x128xbf16>
    tpu.vector_store %arg5[%c20, %c0_8], %12 {strides = array<i32>} : memref<32x128xbf16, #tpu.memory_space<vmem>>, vector<4x128xbf16>,
    %14 = vector.extract_strided_slice %1 {offsets = [0, 6], sizes = [4, 128], strides = [1, 1]} : vector<4x256xbf16> to vector<4x128xbf16>
    %c24 = arith.constant 24 : index
    %c0_9 = arith.constant 0 : index
    %15 = vector.load %arg5[%c24, %c0_9] : memref<32x128xbf16, #tpu.memory_space<vmem>>, vector<4x128xbf16>
    tpu.vector_store %arg5[%c24, %c0_9], %14 {strides = array<i32>} : memref<32x128xbf16, #tpu.memory_space<vmem>>, vector<4x128xbf16>,
    %16 = vector.extract_strided_slice %1 {offsets = [0, 7], sizes = [4, 128], strides = [1, 1]} : vector<4x256xbf16> to vector<4x128xbf16>
    %c28 = arith.constant 28 : index
    %c0_10 = arith.constant 0 : index
    %17 = vector.load %arg5[%c28, %c0_10] : memref<32x128xbf16, #tpu.memory_space<vmem>>, vector<4x128xbf16>
    tpu.vector_store %arg5[%c28, %c0_10], %16 {strides = array<i32>} : memref<32x128xbf16, #tpu.memory_space<vmem>>, vector<4x128xbf16>,
    %c0_11 = arith.constant 0 : index
    %c0_12 = arith.constant 0 : index
    %18 = vector.load %arg2[%c0_11, %c0_12] : memref<32x32xbf16, #tpu.memory_space<vmem>>, vector<32x32xbf16>
    %c0_13 = arith.constant 0 : index
    %c0_14 = arith.constant 0 : index
    %19 = vector.load %arg5[%c0_13, %c0_14] : memref<32x128xbf16, #tpu.memory_space<vmem>>, vector<32x128xbf16>
    %cst = arith.constant dense<0.000000e+00> : vector<32x128xf32>
    %20 = tpu.matmul %18, %19, %cst {dimension_numbers = #tpu.dot_dimension_numbers<[1], [0], [0], [1], [0, 0, 1, 1], [], []>} : vector<32x32xbf16>, vector<32x128xbf16>, vector<32x128xf32> -> vector<32x128xf32>
    %c0_15 = arith.constant 0 : index
    %c0_16 = arith.constant 0 : index
    %21 = vector.load %arg3[%c0_15, %c0_16] : memref<32x1xf32, #tpu.memory_space<vmem>>, vector<32x1xf32>
    %22 = vector.broadcast %21 : vector<32x1xf32> to vector<32x128xf32>
    %23 = arith.addf %20, %22 : vector<32x128xf32>
    %c0_17 = arith.constant 0 : index
    %c0_18 = arith.constant 0 : index
    %c0_19 = arith.constant 0 : index
    %24 = vector.load %arg4[%c0_17, %c0_18, %c0_19] : memref<1x32x128xf32, #tpu.memory_space<vmem>>, vector<1x32x128xf32>
    %25 = vector.shape_cast %24 : vector<1x32x128xf32> to vector<32x128xf32>
    %26 = vector.shape_cast %23 : vector<32x128xf32> to vector<1x32x128xf32>
    tpu.vector_store %arg4[%c0_17, %c0_18, %c0_19], %26 {strides = array<i32>} : memref<1x32x128xf32, #tpu.memory_space<vmem>>, vector<1x32x128xf32>,
    return
  }
  func.func @transform_0(%arg0: i32) -> (i32, i32, i32) {
    %c0_i32 = arith.constant 0 : i32
    %c0_i32_0 = arith.constant 0 : i32
    %c0_i32_1 = arith.constant 0 : i32
    return %arg0, %c0_i32, %c0_i32_0 : i32, i32, i32
  }
  func.func @transform_1(%arg0: i32) -> (i32, i32) {
    %c0_i32 = arith.constant 0 : i32
    %c0_i32_0 = arith.constant 0 : i32
    %c0_i32_1 = arith.constant 0 : i32
    return %c0_i32, %c0_i32_0 : i32, i32
  }
  func.func @transform_2(%arg0: i32) -> (i32, i32) {
    %c0_i32 = arith.constant 0 : i32
    %c0_i32_0 = arith.constant 0 : i32
    %c0_i32_1 = arith.constant 0 : i32
    return %c0_i32, %c0_i32_0 : i32, i32
  }
  func.func @transform_3(%arg0: i32) -> (i32, i32, i32) {
    %c0_i32 = arith.constant 0 : i32
    %c0_i32_0 = arith.constant 0 : i32
    %c0_i32_1 = arith.constant 0 : i32
    return %arg0, %c0_i32, %c0_i32_0 : i32, i32, i32
  }
}

</mosaic_0001>

<llo_original>
// kernel: tpu_custom_call.1
$region0: #{tpu_custom_call.1}
  #allocation0 [shape = 'u32[]', space=smem, size = 0x4, offset = 0x4, fixed_abs, tag = 'smem constant byte address 0x4 - core index']
  #allocation1 [shape = 'u32[144,128]{1,0:T(1,128)}', space=vmem, size = 0x12000, scoped, tag = 'internal scratch']
  #allocation2 [shape = 'bf16[32,128]{1,0:T(8,128)(2,1)}', space=vmem, size = 0x2000, scoped, tag = 'scratch operand']
  %s0 = inlined_call_operand.vmem [shape: bf16[2,4,256], index: 0, kind: input, shape index: {}]
  %s1 = inlined_call_operand.vmem [shape: bf16[32,32], index: 1, kind: input, shape index: {}]
  %s2 = inlined_call_operand.vmem [shape: f32[32,1], index: 2, kind: input, shape index: {}]
  %s3 = inlined_call_operand.hbm [shape: f32[2,32,128], index: 3, kind: output, shape index: {}]
  %s4 = sld [smem:[#allocation0]]
  $region45: #{tpu_custom_call.1} parent=0
    _
  %s6 = ssub.s32 1, %s4
  %s7 = scalar_select 0, %s6, %s4
  $region1: #{tpu_custom_call.1} parent=0
    #allocation3 [shape = 'u8[32768]{0}', space=vmem, size = 0x8000, scoped, tag = 'output window, operand 0']
    #allocation4 [shape = 's32[2]{0}', space=sflag, size = 0x8, scoped, tag = 'scoped memory for tpu_custom_call.1']
    %8 = vsyncpa [#allocation4], 0
    %s9 = scalar_lea.sflag [#allocation4], 1
    %10 = vsyncpa %s9, 0
    loop: start=0, step=1, limit=4
    $region2: #{tpu_custom_call.1} parent=1 // loop_pre_header
      _
    $region3: #{tpu_custom_call.1} parent=1 // loop_header
      %s12 = sphi 0, %s16
      %p13 = scmp.ge.s32.totalorder %s12, 4
      %s22 = sphi 0, %s24
      %s25 = sphi 0, %s22
      %s26 = sphi 0, %s25
      %s42 = sphi 0, %s26
      %s46 = sphi 0, %s46
      %s48 = sphi 0, %s46
      %s49 = sphi 0, %s48
      %s63 = sphi 0, %s49
      %s67 = sphi 0, %s67
      %s69 = sphi 0, %s67
      %s70 = sphi 0, %s69
      %s84 = sphi 0, %s70
      %s90 = sphi 0, %s92
      %s93 = sphi 0, %s90
      %s94 = sphi 0, %s93
      %s110 = sphi 0, %s94
    $region4: #{tpu_custom_call.1} parent=1 // loop_header_branch
      %15 = sbr.rel (%p13) target = $region8
    $region5: #{tpu_custom_call.1} parent=1 // loop_body
      %s17 = ssub.s32 %s12, 1
      %s18 = ssub.s32 %s12, 2
      %s19 = sadd.s32 %s12, 1
      %s20 = ssub.s32 %s12, %s19
      %p21 = scmp.eq.s32.totalorder %s20, 0
      %s23 = sadd.s32 %s22, 1
      %s24 = scalar_select %p21, %s22, %s23
      %p27 = pneg %p21
      %p28 = scmp.eq.s32.totalorder %s12, 1
      %p29 = por %p27, %p28
      %p30 = scmp.ne.s32.totalorder %s22, %s25
      %p31 = scmp.eq.s32.totalorder %s12, 0
      %p32 = por %p30, %p31
      %p33 = scmp.ne.s32.totalorder %s22, %s25
      %p34 = scmp.eq.s32.totalorder %s17, 1
      %p35 = por %p33, %p34
      %p36 = scmp.ne.s32.totalorder %s25, %s26
      %p37 = scmp.eq.s32.totalorder %s17, 0
      %p38 = por %p36, %p37
      %p39 = scmp.ne.s32.totalorder %s25, %s26
      %p40 = scmp.eq.s32.totalorder %s18, 1
      %p41 = por %p39, %p40
      %p43 = scmp.ne.s32.totalorder %s26, %s42
      %p44 = scmp.eq.s32.totalorder %s18, 0
      %p45 = por %p43, %p44
      %s47 = sadd.s32 %s46, 1
      %p50 = scmp.eq.s32.totalorder %s12, 1
      %p51 = scmp.ne.s32.totalorder %s46, %s48
      %p52 = scmp.eq.s32.totalorder %s12, 0
      %p53 = por %p51, %p52
      %p54 = scmp.ne.s32.totalorder %s46, %s48
      %p55 = scmp.eq.s32.totalorder %s17, 1
      %p56 = por %p54, %p55
      %p57 = scmp.ne.s32.totalorder %s48, %s49
      %p58 = scmp.eq.s32.totalorder %s17, 0
      %p59 = por %p57, %p58
      %p60 = scmp.ne.s32.totalorder %s48, %s49
      %p61 = scmp.eq.s32.totalorder %s18, 1
      %p62 = por %p60, %p61
      %p64 = scmp.ne.s32.totalorder %s49, %s63
      %p65 = scmp.eq.s32.totalorder %s18, 0
      %p66 = por %p64, %p65
      %s68 = sadd.s32 %s67, 1
      %p71 = scmp.eq.s32.totalorder %s12, 1
      %p72 = scmp.ne.s32.totalorder %s67, %s69
      %p73 = scmp.eq.s32.totalorder %s12, 0
      %p74 = por %p72, %p73
      %p75 = scmp.ne.s32.totalorder %s67, %s69
      %p76 = scmp.eq.s32.totalorder %s17, 1
      %p77 = por %p75, %p76
      %p78 = scmp.ne.s32.totalorder %s69, %s70
      %p79 = scmp.eq.s32.totalorder %s17, 0
      %p80 = por %p78, %p79
      %p81 = scmp.ne.s32.totalorder %s69, %s70
      %p82 = scmp.eq.s32.totalorder %s18, 1
      %p83 = por %p81, %p82
      %p85 = scmp.ne.s32.totalorder %s70, %s84
      %p86 = scmp.eq.s32.totalorder %s18, 0
      %p87 = por %p85, %p86
      %s88 = ssub.s32 %s12, %s19
      %p89 = scmp.eq.s32.totalorder %s88, 0
      %s91 = sadd.s32 %s90, 1
      %s92 = scalar_select %p89, %s90, %s91
      %p95 = pneg %p89
      %p96 = scmp.eq.s32.totalorder %s12, 1
      %p97 = por %p95, %p96
      %p98 = scmp.ne.s32.totalorder %s90, %s93
      %p99 = scmp.eq.s32.totalorder %s12, 0
      %p100 = por %p98, %p99
      %p101 = scmp.ne.s32.totalorder %s90, %s93
      %p102 = scmp.eq.s32.totalorder %s17, 1
      %p103 = por %p101, %p102
      %p104 = scmp.ne.s32.totalorder %s93, %s94
      %p105 = scmp.eq.s32.totalorder %s17, 0
      %p106 = por %p104, %p105
      %p107 = scmp.ne.s32.totalorder %s93, %s94
      %p108 = scmp.eq.s32.totalorder %s18, 1
      %p109 = por %p107, %p108
      %p111 = scmp.ne.s32.totalorder %s94, %s110
      %p112 = scmp.eq.s32.totalorder %s18, 0
      %p113 = por %p111, %p112
      %p114 = scmp.le.s32.totalorder 1, %s12
      %p115 = scmp.lt.s32.totalorder %s12, 3
      %p116 = pnand %p114, %p115
      %p117 = pneg %p116
      // Predicated region
      $region9: #{tpu_custom_call.1} parent=5 // pred_check
        _
      $region10: #{tpu_custom_call.1} parent=5 // pred_check_branch
        %119 = sbr.rel (%p116) target = $region12
      $region11: #{tpu_custom_call.1} parent=5 // pred_region
        %s120 = ssub.s32 %s12, 1
        // Predicated region
        $region13: #{tpu_custom_call.1} parent=11 // pred_check
          %p121 = pneg %p59
        $region14: #{tpu_custom_call.1} parent=11 // pred_check_branch
          %123 = sbr.rel (%p121) target = $region16
        $region15: #{tpu_custom_call.1} parent=11 // pred_region
          _
        $region16: #{tpu_custom_call.1} parent=11 // pred_fallthru
          _
        // Predicated region
        $region17: #{tpu_custom_call.1} parent=11 // pred_check
          %p124 = pneg %p80
        $region18: #{tpu_custom_call.1} parent=11 // pred_check_branch
          %126 = sbr.rel (%p124) target = $region20
        $region19: #{tpu_custom_call.1} parent=11 // pred_region
          _
        $region20: #{tpu_custom_call.1} parent=11 // pred_fallthru
          _
      $region12: #{tpu_custom_call.1} parent=5 // pred_fallthru
        _
      %p127 = scmp.lt.s32.totalorder %s12, 2
      // Predicated region
      $region21: #{tpu_custom_call.1} parent=5 // pred_check
        %p128 = pneg %p127
      $region22: #{tpu_custom_call.1} parent=5 // pred_check_branch
        %130 = sbr.rel (%p128) target = $region24
      $region23: #{tpu_custom_call.1} parent=5 // pred_region
        // Predicated region
        $region25: #{tpu_custom_call.1} parent=23 // pred_check
          %p131 = pneg %p32
        $region26: #{tpu_custom_call.1} parent=23 // pred_check_branch
          %133 = sbr.rel (%p131) target = $region28
        $region27: #{tpu_custom_call.1} parent=23 // pred_region
          %p134 = scmp.lt.s32.totalorder %s12, 1
          %s135 = scalar_select %p134, %s12, 1
          %s136 = smul.addr %s135, 2
          %s137 = smul.addr %s136, 2
          %s138 = scalar_lea.vmem %s0, %s137
        $region28: #{tpu_custom_call.1} parent=23 // pred_fallthru
          _
      $region24: #{tpu_custom_call.1} parent=5 // pred_fallthru
        _
      %p139 = scmp.le.s32.totalorder 1, %s12
      %p140 = scmp.lt.s32.totalorder %s12, 3
      %p141 = pnand %p139, %p140
      %p142 = pneg %p141
      // Predicated region
      $region29: #{tpu_custom_call.1} parent=5 // pred_check
        _
      $region30: #{tpu_custom_call.1} parent=5 // pred_check_branch
        %144 = sbr.rel (%p141) target = $region32
      $region31: #{tpu_custom_call.1} parent=5 // pred_region
        %s145 = ssub.s32 %s12, 1
        %p146 = scmp.lt.s32.totalorder %s17, 1
        %s147 = scalar_select %p146, %s17, 1
        %s148 = smul.addr %s147, 2
        %s149 = smul.addr %s148, 2
        %s150 = scalar_lea.vmem %s0, %s149
        %p151 = pneg %p38
        %p152 = pneg %p35
        %p153 = pneg %p59
        %p154 = pneg %p56
        %p155 = pneg %p80
        %p156 = pneg %p77
        %p157 = pneg %p106
        %p158 = pneg %p103
        %s159 = sand.u32 %s93, 1
        %s160 = scalar_lea.sflag [#allocation4], %s159
        %s161 = sand.u32 %s93, 1
        %s162 = smul.addr %s161, 32
        %s163 = scalar_lea.vmem [#allocation3], %s162
        %p164 = scmp.lt.s32.totalorder %s17, 1
        %s165 = scalar_select %p164, %s17, 1
        %s166 = smul.addr %s165, 2
        %s167 = smul.addr %s166, 2
        %s168 = scalar_lea.vmem %s0, %s167
        %v170 = vld [vmem:[%s168] sm:$0xf]
        %171 = vst [vmem:[#allocation2] sm:$0x3] %v170
        %v173 = vcombine.low %v170, %v170
        %v175 = vunpack.c.l.s4 1983009808
        %v176 = vunpack.c.0.s8 %v175
        %v177 = vlaneseq
        %v178 = vshrl.u32 %v177, 7
        %v179 = vsub.s32 %v176, %v178
        %v180 = vrot.slane %v173, %v179
        %181 = vrot.lane.b32.xlu0 %v180, 127
        %v182 = vpop.permute.xlu0 %181
        %v183 = vrot.slane %v182, 4
        %vm184 = vcmask 1039360
        %v185 = vsel %vm184, %v182, %v183
        %187 = vst [vmem:[#allocation2] sm:$0xc] %v185
        %v189 = vunpack.c.l.s4 1983009808
        %v190 = vunpack.c.0.s8 %v189
        %v191 = vlaneseq
        %v192 = vshrl.u32 %v191, 7
        %v193 = vsub.s32 %v190, %v192
        %v194 = vrot.slane %v170, %v193
        %195 = vrot.lane.b32.xlu0 %v194, 126
        %v196 = vpop.permute.xlu0 %195
        %v197 = vrot.slane %v196, 4
        %vm198 = vcmask 1031168
        %v199 = vsel %vm198, %v196, %v197
        %201 = vst [vmem:[#allocation2 + $0x4] sm:$0x3] %v199
        %202 = vrot.lane.b32.xlu0 %v180, 125
        %v203 = vpop.permute.xlu0 %202
        %v204 = vrot.slane %v203, 4
        %vm205 = vcmask 1022976
        %v206 = vsel %vm205, %v203, %v204
        %208 = vst [vmem:[#allocation2 + $0x4] sm:$0xc] %v206
        %209 = vrot.lane.b32.xlu0 %v194, 124
        %v210 = vpop.permute.xlu0 %209
        %v211 = vrot.slane %v210, 4
        %vm212 = vcmask 1014784
        %v213 = vsel %vm212, %v210, %v211
        %215 = vst [vmem:[#allocation2 + $0x8] sm:$0x3] %v213
        %216 = vrot.lane.b32.xlu0 %v180, 123
        %v217 = vpop.permute.xlu0 %216
        %v218 = vrot.slane %v217, 4
        %vm219 = vcmask 1006592
        %v220 = vsel %vm219, %v217, %v218
        %222 = vst [vmem:[#allocation2 + $0x8] sm:$0xc] %v220
        %223 = vrot.lane.b32.xlu0 %v194, 122
        %v224 = vpop.permute.xlu0 %223
        %v225 = vrot.slane %v224, 4
        %vm226 = vcmask 998400
        %v227 = vsel %vm226, %v224, %v225
        %229 = vst [vmem:[#allocation2 + $0xc] sm:$0x3] %v227
        %230 = vrot.lane.b32.xlu0 %v180, 121
        %v231 = vpop.permute.xlu0 %230
        %v232 = vrot.slane %v231, 4
        %vm233 = vcmask 990208
        %v234 = vsel %vm233, %v231, %v232
        %236 = vst [vmem:[#allocation2 + $0xc] sm:$0xc] %v234
        %v237 = vld [vmem:[%s1] sm:$0xf]
        %v238 = vld [vmem:[%s1 + $0x4] sm:$0xf]
        %v239 = vld [vmem:[%s1 + $0x8] sm:$0xf]
        %v240 = vld [vmem:[%s1 + $0xc] sm:$0xf]
        %v241 = vld [vmem:[#allocation2] sm:$0xf]
        %v242 = vld [vmem:[#allocation2 + $0x4] sm:$0xf]
        %v243 = vld [vmem:[#allocation2 + $0x8] sm:$0xf]
        %v244 = vld [vmem:[#allocation2 + $0xc] sm:$0xf]
        %v245 = vld [vmem:[%s2] sm:$0xff]
        %v246 = vld [vmem:[%s2 + $0x8] sm:$0xff]
        %v247 = vld [vmem:[%s2 + $0x10] sm:$0xff]
        %v248 = vld [vmem:[%s2 + $0x18] sm:$0xff]
        %250 = vset.pattern.permute.xlu0 0
        %251 = vperm.xlu0 %250, %v245
        %v252 = vpop.permute.xlu0 %251
        %255 = vset.pattern.permute.xlu0 0
        %256 = vperm.xlu0 %255, %v246
        %v257 = vpop.permute.xlu0 %256
        %260 = vset.pattern.permute.xlu0 0
        %261 = vperm.xlu0 %260, %v247
        %v262 = vpop.permute.xlu0 %261
        %265 = vset.pattern.permute.xlu0 0
        %266 = vperm.xlu0 %265, %v248
        %v267 = vpop.permute.xlu0 %266
        %v273 = vunpack.c.l.b16 %v237
        %v274 = vunpack.c.l.b16 %v238
        %v275 = vunpack.c.l.b16 %v239
        %v276 = vunpack.c.l.b16 %v240
        %v277 = vpack.c.b16 %v274, %v273
        %v278 = vpack.c.b16 %v276, %v275
        %v283 = vunpack.c.l.b16 %v241
        %v284 = vunpack.c.l.b16 %v242
        %v285 = vunpack.c.l.b16 %v243
        %v286 = vunpack.c.l.b16 %v244
        %v287 = vpack.c.b16 %v284, %v283
        %v288 = vpack.c.b16 %v286, %v285
        %vm291 = vcmask 261120
        %v293 = vsel %vm291, %v277, 0
        %v296 = vsel %vm291, %v278, 0
        %298 = vmatprep.subr.bf16.mxu0 0
        %299 = vmatpush1.bf16.msra.mxu0 0
        %300 = vmatprep.subr.bf16.mxu0 0
        %301 = vmatpush1.bf16.msra.mxu0 0
        %302 = vmatprep.subr.bf16.mxu0 0
        %303 = vmatpush1.bf16.msra.mxu0 0
        %304 = vmatprep.subr.bf16.mxu0 0
        %305 = vmatpush1.bf16.msra.mxu0 0
        %306 = vmatprep.subr.bf16.mxu0 0
        %307 = vmatpush1.bf16.msra.mxu0 0
        %308 = vmatprep.subr.bf16.mxu0 0
        %309 = vmatpush1.bf16.msra.mxu0 0
        %310 = vmatprep.subr.bf16.mxu0 0
        %311 = vmatpush1.bf16.msra.mxu0 %v288
        %312 = vmatprep.subr.bf16.mxu0 0
        %313 = vmatpush1.bf16.msra.mxu0 %v287
        %314 = vmatprep.subr.bf16.mxu0 0
        %315 = vmatpush2.bf16.msra.mxu0 0
        %316 = vmatprep.subr.bf16.mxu0 0
        %317 = vmatpush2.bf16.msra.mxu0 0
        %318 = vmatprep.subr.bf16.mxu0 0
        %319 = vmatpush2.bf16.msra.mxu0 0
        %320 = vmatprep.subr.bf16.mxu0 0
        %321 = vmatpush2.bf16.msra.mxu0 0
        %322 = vmatprep.subr.bf16.mxu0 0
        %323 = vmatpush2.bf16.msra.mxu0 0
        %324 = vmatprep.subr.bf16.mxu0 0
        %325 = vmatpush2.bf16.msra.mxu0 0
        %326 = vmatprep.subr.bf16.mxu0 0
        %327 = vmatpush2.bf16.msra.mxu0 0
        %328 = vmatprep.subr.bf16.mxu0 0
        %329 = vmatpush2.bf16.msra.mxu0 0
        %330 = vmatprep.mubr.bf16.mxu0 0
        %331 = vmatmul.mubr.bf16.gmra.mxu0 %v293
        %v332 = vpop.f32.mrf.mxu0
        %v333 = vadd.f32 %v252, %v332
        %v334 = vpop.f32.mrf.mxu0
        %v335 = vpop.f32.mrf.mxu0
        %v336 = vadd.f32 %v257, %v335
        %v337 = vpop.f32.mrf.mxu0
        %338 = vmatprep.mubr.bf16.mxu0 0
        %339 = vmatmul.mubr.bf16.gmra.mxu0 %v296
        %v340 = vpop.f32.mrf.mxu0
        %v341 = vadd.f32 %v262, %v340
        %v342 = vpop.f32.mrf.mxu0
        %v343 = vpop.f32.mrf.mxu0
        %v344 = vadd.f32 %v267, %v343
        %v345 = vpop.f32.mrf.mxu0
        %346 = vdwg.mxu0
        %347 = vst [vmem:[%s163] sm:$0xff] %v333
        %348 = vst [vmem:[%s163 + $0x8] sm:$0xff] %v336
        %349 = vst [vmem:[%s163 + $0x10] sm:$0xff] %v341
        %350 = vst [vmem:[%s163 + $0x18] sm:$0xff] %v344
        %s351 = sand.u32 %s93, 1
        %s352 = scalar_lea.sflag [#allocation4], %s351
        %s353 = sand.u32 %s93, 1
        %s354 = smul.addr %s353, 32
        %s355 = scalar_lea.vmem [#allocation3], %s354
        // Predicated region
        $region33: #{tpu_custom_call.1} parent=31 // pred_check
          %p356 = pneg %p103
        $region34: #{tpu_custom_call.1} parent=31 // pred_check_branch
          %358 = sbr.rel (%p356) target = $region36
        $region35: #{tpu_custom_call.1} parent=31 // pred_region
          %s360 = ssub.s32 512, 512
          %361 = vsyncadd %s352, %s360
          %s362 = smul.addr %s17, 4
          %s363 = smul.addr %s362, 128
          %s364 = scalar_lea.hbm %s3, %s363
          %s365 = sshll.u32 %s355, 4
          %s366 = int_to_ptr.vmem [resolvable:$true] %s365
          %371 = dma.vmem_to_hbm [thread:$0]  %s366, 512, %s364, %s352, 128, 128, 8
        $region36: #{tpu_custom_call.1} parent=31 // pred_fallthru
          _
      $region32: #{tpu_custom_call.1} parent=5 // pred_fallthru
        _
      %p372 = scmp.le.s32.totalorder 2, %s12
      // Predicated region
      $region37: #{tpu_custom_call.1} parent=5 // pred_check
        %p373 = pneg %p372
      $region38: #{tpu_custom_call.1} parent=5 // pred_check_branch
        %375 = sbr.rel (%p373) target = $region40
      $region39: #{tpu_custom_call.1} parent=5 // pred_region
        %s376 = ssub.s32 %s12, 2
        // Predicated region
        $region41: #{tpu_custom_call.1} parent=39 // pred_check
          %p377 = pneg %p109
        $region42: #{tpu_custom_call.1} parent=39 // pred_check_branch
          %379 = sbr.rel (%p377) target = $region44
        $region43: #{tpu_custom_call.1} parent=39 // pred_region
          %s380 = sand.u32 %s94, 1
          %s381 = scalar_lea.sflag [#allocation4], %s380
          %s382 = sand.u32 %s94, 1
          %s383 = smul.addr %s382, 32
          %s384 = scalar_lea.vmem [#allocation3], %s383
          %385 = dma.done %s381, 512
        $region44: #{tpu_custom_call.1} parent=39 // pred_fallthru
          _
      $region40: #{tpu_custom_call.1} parent=5 // pred_fallthru
        _
    $region6: #{tpu_custom_call.1} parent=1 // loop_footer
      %s16 = sadd.s32 1, %s12
    $region7: #{tpu_custom_call.1} parent=1 // loop_footer_branch
      %11 = sbr.rel target = $region3
    $region8: #{tpu_custom_call.1} parent=1 // loop_exit
      _
    %386 = vsyncpa [#allocation4], 1
    %s387 = scalar_lea.sflag [#allocation4], 1
    %388 = vsyncpa %s387, 1

</llo_original>
